<compile_context>
chip_gen: v5e
topology: v5e:2x2
jax: 0.10.0
libtpu: 0.0.40
codegen_flags: <defaults>
</compile_context>

<pallas_src>
import jax
import jax.numpy as jnp
from jax.experimental import pallas as pl
from jax.experimental.pallas import tpu as pltpu


_NEG_BIG = -1e30  # "minus infinity" for padded output lanes (finite -> no NaN)


def _round_up(x, m):
    return ((x + m - 1) // m) * m


def _vmem_budget_bytes(frac=0.8):
    """~80% of this generation's physical VMEM (v5e/v6e: 128 MiB, v7x: 64 MiB)."""
    try:
        cap = int(pltpu.get_tpu_info().vmem_capacity_bytes)
        if cap <= 0:
            raise ValueError(cap)
    except Exception:
        cap = 64 << 20  # conservative (v7x-sized) fallback
    return int(cap * frac)


def _num_tensorcores():
    """TensorCores per chip (v7x: 2, v5e/v6e: 1). Best effort; defaults to 1."""
    try:
        info = pltpu.get_tpu_info()
        for attr in ("num_cores", "core_count", "num_tensorcores"):
            v = getattr(info, attr, None)
            if v is not None:
                return max(1, int(v))
    except Exception:
        pass
    try:
        kind = str(getattr(jax.devices()[0], "device_kind", "")).lower()
        if "v7" in kind or "7x" in kind:
            return 2
    except Exception:
        pass
    return 1


def prepare_dense_params(weight_nk, bias_n, *, lane=128, k_tile=512,
                         compute_dtype=jnp.bfloat16):
    """One-time parameter prep (call ONCE at init, never in the hot path).

    weight_nk: [N, K] PyTorch nn.Linear layout.
    Returns (w_kn [Kp, Np] compute_dtype, bias_row [1, Np] f32, N).
      Np = round_up(N, 128); Kp = round_up(K, k_tile) only when K > 2048 (the
      streaming path), so per-call weight padding is never needed.
    Padded weight rows/cols are 0 and padded bias lanes are a large negative
    value, so padded lanes contribute exp(~-inf)=0 to the softmax.
    """
    N, K = weight_nk.shape
    Np = _round_up(N, lane)
    Kp = _round_up(K, k_tile) if K > 2048 else K
    w_kn = jnp.transpose(weight_nk).astype(compute_dtype)  # [K, N] for the MXU
    pad_k, pad_n = Kp - K, Np - N
    if pad_k or pad_n:
        w_kn = jnp.pad(w_kn, ((0, pad_k), (0, pad_n)))
    b = bias_n.astype(jnp.float32)
    if pad_n:
        b = jnp.pad(b, (0, pad_n), constant_values=_NEG_BIG)
    return w_kn, b.reshape(1, Np), N


def _softmax_epilogue(z, o_ref):
    # z: (bm, Np) f32 logits (bias already added).
    m = jnp.max(z, axis=-1, keepdims=True)
    e = jnp.exp(z - m)
    denom = jnp.sum(e, axis=-1, keepdims=True)
    inv = pl.reciprocal(denom, approx=False)  # exact; only (bm,1) values
    o_ref[...] = (e * inv).astype(o_ref.dtype)


def _dense_softmax_kernel_1k(x_ref, w_ref, b_ref, o_ref):
    """Single K-step path: no accumulator scratch, no zero-init/RMW."""
    xa = x_ref[...]
    if xa.dtype != jnp.bfloat16:
        xa = xa.astype(jnp.bfloat16)
    z = jnp.dot(xa, w_ref[...], preferred_element_type=jnp.float32) + b_ref[...]
    _softmax_epilogue(z, o_ref)


def _dense_softmax_kernel_multik(x_ref, w_ref, b_ref, o_ref, acc_ref):
    """Streaming-K path: f32 VMEM accumulator resident across the K axis."""
    k = pl.program_id(1)

    @pl.when(k == 0)
    def _():
        acc_ref[...] = jnp.zeros_like(acc_ref)

    xa = x_ref[...]
    if xa.dtype != jnp.bfloat16:
        xa = xa.astype(jnp.bfloat16)
    acc_ref[...] += jnp.dot(xa, w_ref[...], preferred_element_type=jnp.float32)

    @pl.when(k == pl.num_programs(1) - 1)
    def _():
        _softmax_epilogue(acc_ref[...] + b_ref[...], o_ref)


def my_dense(x, w_kn, bias_row, n_out=None, *, bm=None, bk=None, out_dtype=None):
    """x: [B, K]; w_kn: [Kp, Np] (pre-transposed, bf16, padded at prep time);
    bias_row: [1, Np] f32.  Returns softmax(x @ W^T + b) of shape [B, n_out]."""
    B, K = x.shape
    Kw, Np = w_kn.shape
    assert Kw >= K, f"prepared weight K ({Kw}) must be >= x K ({K})"
    if n_out is None:
        n_out = Np
    out_dtype = jnp.dtype(out_dtype) if out_dtype is not None else x.dtype

    budget = _vmem_budget_bytes()
    x_it = x.dtype.itemsize
    w_it = w_kn.dtype.itemsize
    o_it = jnp.dtype(out_dtype).itemsize

    # ---- K tiling: keep whole K resident whenever the weight buffers fit ----
    if bk is None:
        resident = (2 * Kw * Np * w_it            # double-buffered weight
                    + 256 * (2 * Kw * x_it + 2 * Np * o_it)  # modest batch tile
                    + 2 * Np * 4)
        bk = Kw if resident <= budget else 512
    bk = min(bk, Kw)
    if bk < Kw:
        bk = max(128, (bk // 128) * 128)  # x's lane dim tile: multiple of 128
    Kp = Kw if bk == Kw else _round_up(Kw, bk)
    n_k = Kp // bk
    bk_eff = Kp if n_k == 1 else bk

    # ---- batch tile: largest multiple of 8 that fits the VMEM budget ----
    if bm is None:
        per_row = 2 * bk_eff * x_it + 2 * Np * o_it + (Np * 4 if n_k > 1 else 0)
        fixed = 2 * bk_eff * Np * w_it + 2 * Np * 4
        avail = max(budget - fixed, 0)
        bm_budget = (avail // max(per_row, 1)) // 8 * 8
        bm = max(8, min(1024, _round_up(B, 8), bm_budget))
        # >=2 batch tiles when there is enough batch (pipelining), and an even
        # count on 2-TensorCore chips (v7x) so both cores get equal work.
        n_b = pl.cdiv(B, bm)
        if B > 8 and n_b < 2:
            n_b = 2
        if _num_tensorcores() > 1 and n_b > 1 and (n_b % 2) != 0:
            n_b += 1
        bm = max(8, _round_up(pl.cdiv(B, n_b), 8))
    bm = max(8, _round_up(bm, 8))
    Bp = _round_up(B, bm)
    grid0 = Bp // bm

    # ---- pad only when unavoidable (zero rows/cols are harmless) ----
    xp = x
    if Bp != B or Kp != K:
        xp = jnp.pad(x, ((0, Bp - B), (0, Kp - K)))
    wp = w_kn
    if Kp != Kw:
        # Only reachable if a caller-supplied bk does not divide the prepped K.
        wp = jnp.pad(w_kn, ((0, Kp - Kw), (0, 0)))

    # ---- VMEM footprint and per-generation limit ----
    footprint = (2 * bm * bk_eff * x_it
                 + 2 * bk_eff * Np * w_it
                 + 2 * bm * Np * o_it
                 + 2 * Np * 4
                 + (bm * Np * 4 if n_k > 1 else 0))
    vmem_limit = int(min(budget, max(4 << 20, int(footprint * 1.5))))

    w_stream_bytes = wp.size * w_it * (grid0 if n_k > 1 else 1)
    cost = pl.CostEstimate(
        flops=2 * Bp * Kp * Np,
        transcendentals=Bp * Np,
        bytes_accessed=int(xp.size * x_it + w_stream_bytes
                           + bias_row.size * 4 + Bp * Np * o_it),
    )

    if n_k == 1:
        kernel = _dense_softmax_kernel_1k
        grid = (grid0,)
        in_specs = [
            pl.BlockSpec((bm, Kp), lambda i: (i, 0)),   # x tile
            pl.BlockSpec((Kp, Np), lambda i: (0, 0)),   # whole weight, resident
            pl.BlockSpec((1, Np), lambda i: (0, 0)),    # bias
        ]
        out_spec = pl.BlockSpec((bm, Np), lambda i: (i, 0))
        scratch = []
        semantics = ("parallel",)
    else:
        kernel = _dense_softmax_kernel_multik
        grid = (grid0, n_k)
        in_specs = [
            pl.BlockSpec((bm, bk), lambda i, k: (i, k)),   # x tile
            pl.BlockSpec((bk, Np), lambda i, k: (k, 0)),   # weight slab
            pl.BlockSpec((1, Np), lambda i, k: (0, 0)),    # bias
        ]
        out_spec = pl.BlockSpec((bm, Np), lambda i, k: (i, 0))
        scratch = [pltpu.VMEM((bm, Np), jnp.float32)]
        semantics = ("parallel", "arbitrary")

    out = pl.pallas_call(
        kernel,
        out_shape=jax.ShapeDtypeStruct((Bp, Np), out_dtype),
        grid_spec=pltpu.PrefetchScalarGridSpec(
            num_scalar_prefetch=0,
            grid=grid,
            in_specs=in_specs,
            out_specs=out_spec,
            scratch_shapes=scratch,
        ),
        compiler_params=pltpu.CompilerParams(
            dimension_semantics=semantics,
            vmem_limit_bytes=vmem_limit,
        ),
        cost_estimate=cost,
    )(xp, wp, bias_row)

    # TODO(synk): consumers that accept the Np-padded / Bp-padded output should
    # skip this slice (an extra HBM pass) or fuse it into the next op.
    if Bp != B or n_out != Np:
        out = out[:B, :n_out]
    return out


if __name__ == "__main__":
    key = jax.random.PRNGKey(0)
    kx, kw, kb, kx2, kw2, kb2 = jax.random.split(key, 6)

    # ---- Path 1: small K (single K-step kernel), N=48 exercises lane padding ----
    batch, input_dim, output_dim = 512, 64, 48
    bound = 1.0 / (input_dim ** 0.5)  # PyTorch-style U(-1/sqrt(in), 1/sqrt(in))
    weight = jax.random.uniform(kw, (output_dim, input_dim),
                                minval=-bound, maxval=bound, dtype=jnp.float32)
    bias = jax.random.uniform(kb, (output_dim,),
                              minval=-bound, maxval=bound, dtype=jnp.float32)
    x = jax.random.normal(kx, (batch, input_dim), dtype=jnp.float32)

    w_kn, bias_row, n_out = prepare_dense_params(weight, bias)   # one-time prep
    out = jax.block_until_ready(my_dense(x, w_kn, bias_row, n_out))

    # Reference matching the kernel's math: bf16 MXU inputs, f32 accumulation.
    z_ref = jnp.dot(x.astype(jnp.bfloat16), weight.T.astype(jnp.bfloat16),
                    preferred_element_type=jnp.float32) + bias
    ref = jax.nn.softmax(z_ref, axis=-1)

    assert out.shape == (batch, output_dim)
    assert bool(jnp.all(jnp.isfinite(out))), "non-finite values in output"
    assert jnp.allclose(out, ref, atol=2e-3, rtol=2e-3), "mismatch vs reference (path 1)"
    assert jnp.allclose(jnp.sum(out, axis=-1), 1.0, atol=1e-3), "rows must sum to 1"

    # ---- Path 2: forced K streaming (multi K-step kernel with accumulator) ----
    b2, k2, n2 = 64, 256, 32
    bound2 = 1.0 / (k2 ** 0.5)
    weight2 = jax.random.uniform(kw2, (n2, k2),
                                 minval=-bound2, maxval=bound2, dtype=jnp.float32)
    bias2 = jax.random.uniform(kb2, (n2,),
                               minval=-bound2, maxval=bound2, dtype=jnp.float32)
    x2 = jax.random.normal(kx2, (b2, k2), dtype=jnp.float32)

    w2_kn, bias2_row, n2_out = prepare_dense_params(weight2, bias2)
    out2 = jax.block_until_ready(my_dense(x2, w2_kn, bias2_row, n2_out, bk=128))

    z2_ref = jnp.dot(x2.astype(jnp.bfloat16), weight2.T.astype(jnp.bfloat16),
                     preferred_element_type=jnp.float32) + bias2
    ref2 = jax.nn.softmax(z2_ref, axis=-1)

    assert out2.shape == (b2, n2)
    assert bool(jnp.all(jnp.isfinite(out2))), "non-finite values in output (path 2)"
    assert jnp.allclose(out2, ref2, atol=2e-3, rtol=2e-3), "mismatch vs reference (path 2)"
    assert jnp.allclose(jnp.sum(out2, axis=-1), 1.0, atol=1e-3), "rows must sum to 1 (path 2)"

    print("KERNEL_OK")
</pallas_src>

<mosaic_0001>
module attributes {stable_mosaic.version = 11 : i64} {
  func.func @_dense_softmax_kernel_1k(%arg0: i32, %arg1: memref<256x64xf32, #tpu.memory_space<vmem>>, %arg2: memref<64x128xbf16, #tpu.memory_space<vmem>>, %arg3: memref<1x128xf32, #tpu.memory_space<vmem>>, %arg4: memref<256x128xf32, #tpu.memory_space<vmem>>) attributes {dimension_semantics = [#tpu.dimension_semantics<parallel>], iteration_bounds = array<i64: 2>, scalar_prefetch = 0 : i64, scratch_operands = 0 : i64, tpu.core_type = #tpu.core_type<tc>, window_params = [{transform_indices = @transform_0, window_bounds = array<i64: 256, 64>}, {pipeline_mode = #tpu.pipeline_mode<synchronous>, transform_indices = @transform_1, window_bounds = array<i64: 64, 128>}, {pipeline_mode = #tpu.pipeline_mode<synchronous>, transform_indices = @transform_2, window_bounds = array<i64: 1, 128>}, {transform_indices = @transform_3, window_bounds = array<i64: 256, 128>}]} {
    %c0 = arith.constant 0 : index
    %c0_0 = arith.constant 0 : index
    %0 = vector.load %arg1[%c0, %c0_0] : memref<256x64xf32, #tpu.memory_space<vmem>>, vector<256x64xf32>
    %1 = arith.truncf %0 : vector<256x64xf32> to vector<256x64xbf16>
    %c0_1 = arith.constant 0 : index
    %c0_2 = arith.constant 0 : index
    %2 = vector.load %arg2[%c0_1, %c0_2] : memref<64x128xbf16, #tpu.memory_space<vmem>>, vector<64x128xbf16>
    %cst = arith.constant dense<0.000000e+00> : vector<256x128xf32>
    %3 = tpu.matmul %1, %2, %cst {dimension_numbers = #tpu.dot_dimension_numbers<[1], [0], [0], [1], [0, 0, 1, 1], [], []>} : vector<256x64xbf16>, vector<64x128xbf16>, vector<256x128xf32> -> vector<256x128xf32>
    %c0_3 = arith.constant 0 : index
    %c0_4 = arith.constant 0 : index
    %4 = vector.load %arg3[%c0_3, %c0_4] : memref<1x128xf32, #tpu.memory_space<vmem>>, vector<1x128xf32>
    %5 = vector.broadcast %4 : vector<1x128xf32> to vector<256x128xf32>
    %6 = arith.addf %3, %5 : vector<256x128xf32>
    %cst_5 = arith.constant dense<0xFF800000> : vector<256xf32>
    %7 = vector.multi_reduction <maximumf>, %6, %cst_5 [1] : vector<256x128xf32> to vector<256xf32>
    %8 = vector.shape_cast %7 : vector<256xf32> to vector<256x1xf32>
    %9 = vector.broadcast %8 : vector<256x1xf32> to vector<256x128xf32>
    %10 = arith.subf %6, %9 : vector<256x128xf32>
    %11 = math.exp %10 : vector<256x128xf32>
    %cst_6 = arith.constant dense<0.000000e+00> : vector<256xf32>
    %12 = vector.multi_reduction <add>, %11, %cst_6 [1] : vector<256x128xf32> to vector<256xf32>
    %13 = vector.shape_cast %12 : vector<256xf32> to vector<256x1xf32>
    %14 = tpu.reciprocal %13 : vector<256x1xf32> -> vector<256x1xf32>
    %15 = vector.broadcast %14 : vector<256x1xf32> to vector<256x128xf32>
    %16 = arith.mulf %11, %15 : vector<256x128xf32>
    %c0_7 = arith.constant 0 : index
    %c0_8 = arith.constant 0 : index
    %17 = vector.load %arg4[%c0_7, %c0_8] : memref<256x128xf32, #tpu.memory_space<vmem>>, vector<256x128xf32>
    tpu.vector_store %arg4[%c0_7, %c0_8], %16 {strides = array<i32>} : memref<256x128xf32, #tpu.memory_space<vmem>>, vector<256x128xf32>,
    return
  }
  func.func @transform_0(%arg0: i32) -> (i32, i32) {
    %c0_i32 = arith.constant 0 : i32
    %c0_i32_0 = arith.constant 0 : i32
    return %arg0, %c0_i32 : i32, i32
  }
  func.func @transform_1(%arg0: i32) -> (i32, i32) {
    %c0_i32 = arith.constant 0 : i32
    %c0_i32_0 = arith.constant 0 : i32
    %c0_i32_1 = arith.constant 0 : i32
    return %c0_i32, %c0_i32_0 : i32, i32
  }
  func.func @transform_2(%arg0: i32) -> (i32, i32) {
    %c0_i32 = arith.constant 0 : i32
    %c0_i32_0 = arith.constant 0 : i32
    %c0_i32_1 = arith.constant 0 : i32
    return %c0_i32, %c0_i32_0 : i32, i32
  }
  func.func @transform_3(%arg0: i32) -> (i32, i32) {
    %c0_i32 = arith.constant 0 : i32
    %c0_i32_0 = arith.constant 0 : i32
    return %arg0, %c0_i32 : i32, i32
  }
}

</mosaic_0001>

<llo_original>
// kernel: tpu_custom_call.1
$region0: #{tpu_custom_call.1}
  #allocation0 [shape = 'u32[]', space=smem, size = 0x4, offset = 0x4, fixed_abs, tag = 'smem constant byte address 0x4 - core index']
  #allocation1 [shape = 'u32[72,128]{1,0:T(1,128)}', space=vmem, size = 0x9000, scoped, tag = 'internal scratch']
  %s0 = inlined_call_operand.vmem [shape: f32[512,64], index: 0, kind: input, shape index: {}]
  %s1 = inlined_call_operand.vmem [shape: bf16[64,128], index: 1, kind: input, shape index: {}]
  %s2 = inlined_call_operand.vmem [shape: f32[1,128], index: 2, kind: input, shape index: {}]
  %s3 = inlined_call_operand.hbm [shape: f32[512,128], index: 3, kind: output, shape index: {}]
  %s4 = sld [smem:[#allocation0]]
  $region45: #{tpu_custom_call.1} parent=0
    _
  %s6 = ssub.s32 1, %s4
  %s7 = scalar_select 0, %s6, %s4
  $region1: #{tpu_custom_call.1} parent=0
    #allocation2 [shape = 'u8[262144]{0}', space=vmem, size = 0x40000, scoped, tag = 'output window, operand 0']
    #allocation3 [shape = 's32[2]{0}', space=sflag, size = 0x8, scoped, tag = 'scoped memory for tpu_custom_call.1']
    %8 = vsyncpa [#allocation3], 0
    %s9 = scalar_lea.sflag [#allocation3], 1
    %10 = vsyncpa %s9, 0
    loop: start=0, step=1, limit=4
    $region2: #{tpu_custom_call.1} parent=1 // loop_pre_header
      _
    $region3: #{tpu_custom_call.1} parent=1 // loop_header
      %s12 = sphi 0, %s16
      %p13 = scmp.ge.s32.totalorder %s12, 4
      %s22 = sphi 0, %s24
      %s25 = sphi 0, %s22
      %s26 = sphi 0, %s25
      %s42 = sphi 0, %s26
      %s46 = sphi 0, %s46
      %s48 = sphi 0, %s46
      %s49 = sphi 0, %s48
      %s63 = sphi 0, %s49
      %s67 = sphi 0, %s67
      %s69 = sphi 0, %s67
      %s70 = sphi 0, %s69
      %s84 = sphi 0, %s70
      %s90 = sphi 0, %s92
      %s93 = sphi 0, %s90
      %s94 = sphi 0, %s93
      %s110 = sphi 0, %s94
    $region4: #{tpu_custom_call.1} parent=1 // loop_header_branch
      %15 = sbr.rel (%p13) target = $region8
    $region5: #{tpu_custom_call.1} parent=1 // loop_body
      %s17 = ssub.s32 %s12, 1
      %s18 = ssub.s32 %s12, 2
      %s19 = sadd.s32 %s12, 1
      %s20 = ssub.s32 %s12, %s19
      %p21 = scmp.eq.s32.totalorder %s20, 0
      %s23 = sadd.s32 %s22, 1
      %s24 = scalar_select %p21, %s22, %s23
      %p27 = pneg %p21
      %p28 = scmp.eq.s32.totalorder %s12, 1
      %p29 = por %p27, %p28
      %p30 = scmp.ne.s32.totalorder %s22, %s25
      %p31 = scmp.eq.s32.totalorder %s12, 0
      %p32 = por %p30, %p31
      %p33 = scmp.ne.s32.totalorder %s22, %s25
      %p34 = scmp.eq.s32.totalorder %s17, 1
      %p35 = por %p33, %p34
      %p36 = scmp.ne.s32.totalorder %s25, %s26
      %p37 = scmp.eq.s32.totalorder %s17, 0
      %p38 = por %p36, %p37
      %p39 = scmp.ne.s32.totalorder %s25, %s26
      %p40 = scmp.eq.s32.totalorder %s18, 1
      %p41 = por %p39, %p40
      %p43 = scmp.ne.s32.totalorder %s26, %s42
      %p44 = scmp.eq.s32.totalorder %s18, 0
      %p45 = por %p43, %p44
      %s47 = sadd.s32 %s46, 1
      %p50 = scmp.eq.s32.totalorder %s12, 1
      %p51 = scmp.ne.s32.totalorder %s46, %s48
      %p52 = scmp.eq.s32.totalorder %s12, 0
      %p53 = por %p51, %p52
      %p54 = scmp.ne.s32.totalorder %s46, %s48
      %p55 = scmp.eq.s32.totalorder %s17, 1
      %p56 = por %p54, %p55
      %p57 = scmp.ne.s32.totalorder %s48, %s49
      %p58 = scmp.eq.s32.totalorder %s17, 0
      %p59 = por %p57, %p58
      %p60 = scmp.ne.s32.totalorder %s48, %s49
      %p61 = scmp.eq.s32.totalorder %s18, 1
      %p62 = por %p60, %p61
      %p64 = scmp.ne.s32.totalorder %s49, %s63
      %p65 = scmp.eq.s32.totalorder %s18, 0
      %p66 = por %p64, %p65
      %s68 = sadd.s32 %s67, 1
      %p71 = scmp.eq.s32.totalorder %s12, 1
      %p72 = scmp.ne.s32.totalorder %s67, %s69
      %p73 = scmp.eq.s32.totalorder %s12, 0
      %p74 = por %p72, %p73
      %p75 = scmp.ne.s32.totalorder %s67, %s69
      %p76 = scmp.eq.s32.totalorder %s17, 1
      %p77 = por %p75, %p76
      %p78 = scmp.ne.s32.totalorder %s69, %s70
      %p79 = scmp.eq.s32.totalorder %s17, 0
      %p80 = por %p78, %p79
      %p81 = scmp.ne.s32.totalorder %s69, %s70
      %p82 = scmp.eq.s32.totalorder %s18, 1
      %p83 = por %p81, %p82
      %p85 = scmp.ne.s32.totalorder %s70, %s84
      %p86 = scmp.eq.s32.totalorder %s18, 0
      %p87 = por %p85, %p86
      %s88 = ssub.s32 %s12, %s19
      %p89 = scmp.eq.s32.totalorder %s88, 0
      %s91 = sadd.s32 %s90, 1
      %s92 = scalar_select %p89, %s90, %s91
      %p95 = pneg %p89
      %p96 = scmp.eq.s32.totalorder %s12, 1
      %p97 = por %p95, %p96
      %p98 = scmp.ne.s32.totalorder %s90, %s93
      %p99 = scmp.eq.s32.totalorder %s12, 0
      %p100 = por %p98, %p99
      %p101 = scmp.ne.s32.totalorder %s90, %s93
      %p102 = scmp.eq.s32.totalorder %s17, 1
      %p103 = por %p101, %p102
      %p104 = scmp.ne.s32.totalorder %s93, %s94
      %p105 = scmp.eq.s32.totalorder %s17, 0
      %p106 = por %p104, %p105
      %p107 = scmp.ne.s32.totalorder %s93, %s94
      %p108 = scmp.eq.s32.totalorder %s18, 1
      %p109 = por %p107, %p108
      %p111 = scmp.ne.s32.totalorder %s94, %s110
      %p112 = scmp.eq.s32.totalorder %s18, 0
      %p113 = por %p111, %p112
      %p114 = scmp.le.s32.totalorder 1, %s12
      %p115 = scmp.lt.s32.totalorder %s12, 3
      %p116 = pnand %p114, %p115
      %p117 = pneg %p116
      // Predicated region
      $region9: #{tpu_custom_call.1} parent=5 // pred_check
        _
      $region10: #{tpu_custom_call.1} parent=5 // pred_check_branch
        %119 = sbr.rel (%p116) target = $region12
      $region11: #{tpu_custom_call.1} parent=5 // pred_region
        %s120 = ssub.s32 %s12, 1
        // Predicated region
        $region13: #{tpu_custom_call.1} parent=11 // pred_check
          %p121 = pneg %p59
        $region14: #{tpu_custom_call.1} parent=11 // pred_check_branch
          %123 = sbr.rel (%p121) target = $region16
        $region15: #{tpu_custom_call.1} parent=11 // pred_region
          _
        $region16: #{tpu_custom_call.1} parent=11 // pred_fallthru
          _
        // Predicated region
        $region17: #{tpu_custom_call.1} parent=11 // pred_check
          %p124 = pneg %p80
        $region18: #{tpu_custom_call.1} parent=11 // pred_check_branch
          %126 = sbr.rel (%p124) target = $region20
        $region19: #{tpu_custom_call.1} parent=11 // pred_region
          _
        $region20: #{tpu_custom_call.1} parent=11 // pred_fallthru
          _
      $region12: #{tpu_custom_call.1} parent=5 // pred_fallthru
        _
      %p127 = scmp.lt.s32.totalorder %s12, 2
      // Predicated region
      $region21: #{tpu_custom_call.1} parent=5 // pred_check
        %p128 = pneg %p127
      $region22: #{tpu_custom_call.1} parent=5 // pred_check_branch
        %130 = sbr.rel (%p128) target = $region24
      $region23: #{tpu_custom_call.1} parent=5 // pred_region
        // Predicated region
        $region25: #{tpu_custom_call.1} parent=23 // pred_check
          %p131 = pneg %p32
        $region26: #{tpu_custom_call.1} parent=23 // pred_check_branch
          %133 = sbr.rel (%p131) target = $region28
        $region27: #{tpu_custom_call.1} parent=23 // pred_region
          %s134 = smul.u32 32, %s12
          %p135 = scmp.lt.s32.totalorder %s134, 63
          %s136 = scalar_select %p135, %s134, 63
          %s137 = smul.addr %s136, 8
          %s138 = scalar_lea.vmem %s0, %s137
          %s139 = smul.u32 32, %s12
        $region28: #{tpu_custom_call.1} parent=23 // pred_fallthru
          _
      $region24: #{tpu_custom_call.1} parent=5 // pred_fallthru
        _
      %p140 = scmp.le.s32.totalorder 1, %s12
      %p141 = scmp.lt.s32.totalorder %s12, 3
      %p142 = pnand %p140, %p141
      %p143 = pneg %p142
      // Predicated region
      $region29: #{tpu_custom_call.1} parent=5 // pred_check
        _
      $region30: #{tpu_custom_call.1} parent=5 // pred_check_branch
        %145 = sbr.rel (%p142) target = $region32
      $region31: #{tpu_custom_call.1} parent=5 // pred_region
        %s146 = ssub.s32 %s12, 1
        %s147 = smul.u32 32, %s17
        %p148 = scmp.lt.s32.totalorder %s147, 63
        %s149 = scalar_select %p148, %s147, 63
        %s150 = smul.addr %s149, 8
        %s151 = scalar_lea.vmem %s0, %s150
        %p152 = pneg %p38
        %p153 = pneg %p35
        %p154 = pneg %p59
        %p155 = pneg %p56
        %p156 = pneg %p80
        %p157 = pneg %p77
        %p158 = pneg %p106
        %p159 = pneg %p103
        %s160 = sand.u32 %s93, 1
        %s161 = scalar_lea.sflag [#allocation3], %s160
        %s162 = sand.u32 %s93, 1
        %s163 = smul.addr %s162, 256
        %s164 = scalar_lea.vmem [#allocation2], %s163
        %s165 = smul.u32 32, %s17
        %p166 = scmp.lt.s32.totalorder %s165, 63
        %s167 = scalar_select %p166, %s165, 63
        %s168 = smul.addr %s167, 8
        %s169 = scalar_lea.vmem %s0, %s168
        %s170 = smul.u32 32, %s17
        %s171 = smul.u32 32, %s17
        %v173 = vld [vmem:[%s169] sm:$0xff]
        %v174 = vld [vmem:[%s169 + $0x8] sm:$0xff]
        %v175 = vld [vmem:[%s169 + $0x10] sm:$0xff]
        %v176 = vld [vmem:[%s169 + $0x18] sm:$0xff]
        %v177 = vld [vmem:[%s169 + $0x20] sm:$0xff]
        %v178 = vld [vmem:[%s169 + $0x28] sm:$0xff]
        %v179 = vld [vmem:[%s169 + $0x30] sm:$0xff]
        %v180 = vld [vmem:[%s169 + $0x38] sm:$0xff]
        %v181 = vld [vmem:[%s169 + $0x40] sm:$0xff]
        %v182 = vld [vmem:[%s169 + $0x48] sm:$0xff]
        %v183 = vld [vmem:[%s169 + $0x50] sm:$0xff]
        %v184 = vld [vmem:[%s169 + $0x58] sm:$0xff]
        %v185 = vld [vmem:[%s169 + $0x60] sm:$0xff]
        %v186 = vld [vmem:[%s169 + $0x68] sm:$0xff]
        %v187 = vld [vmem:[%s169 + $0x70] sm:$0xff]
        %v188 = vld [vmem:[%s169 + $0x78] sm:$0xff]
        %v189 = vld [vmem:[%s169 + $0x80] sm:$0xff]
        %v190 = vld [vmem:[%s169 + $0x88] sm:$0xff]
        %v191 = vld [vmem:[%s169 + $0x90] sm:$0xff]
        %v192 = vld [vmem:[%s169 + $0x98] sm:$0xff]
        %v193 = vld [vmem:[%s169 + $0xa0] sm:$0xff]
        %v194 = vld [vmem:[%s169 + $0xa8] sm:$0xff]
        %v195 = vld [vmem:[%s169 + $0xb0] sm:$0xff]
        %v196 = vld [vmem:[%s169 + $0xb8] sm:$0xff]
        %v197 = vld [vmem:[%s169 + $0xc0] sm:$0xff]
        %v198 = vld [vmem:[%s169 + $0xc8] sm:$0xff]
        %v199 = vld [vmem:[%s169 + $0xd0] sm:$0xff]
        %v200 = vld [vmem:[%s169 + $0xd8] sm:$0xff]
        %v201 = vld [vmem:[%s169 + $0xe0] sm:$0xff]
        %v202 = vld [vmem:[%s169 + $0xe8] sm:$0xff]
        %v203 = vld [vmem:[%s169 + $0xf0] sm:$0xff]
        %v204 = vld [vmem:[%s169 + $0xf8] sm:$0xff]
        %v205 = vpack.c.bf16 %v174, %v173
        %v206 = vpack.c.bf16 %v176, %v175
        %v207 = vpack.c.bf16 %v178, %v177
        %v208 = vpack.c.bf16 %v180, %v179
        %v209 = vpack.c.bf16 %v182, %v181
        %v210 = vpack.c.bf16 %v184, %v183
        %v211 = vpack.c.bf16 %v186, %v185
        %v212 = vpack.c.bf16 %v188, %v187
        %v213 = vpack.c.bf16 %v190, %v189
        %v214 = vpack.c.bf16 %v192, %v191
        %v215 = vpack.c.bf16 %v194, %v193
        %v216 = vpack.c.bf16 %v196, %v195
        %v217 = vpack.c.bf16 %v198, %v197
        %v218 = vpack.c.bf16 %v200, %v199
        %v219 = vpack.c.bf16 %v202, %v201
        %v220 = vpack.c.bf16 %v204, %v203
        %v221 = vld [vmem:[%s1] sm:$0xf]
        %v222 = vld [vmem:[%s1 + $0x4] sm:$0xf]
        %v223 = vld [vmem:[%s1 + $0x8] sm:$0xf]
        %v224 = vld [vmem:[%s1 + $0xc] sm:$0xf]
        %v225 = vld [vmem:[%s1 + $0x10] sm:$0xf]
        %v226 = vld [vmem:[%s1 + $0x14] sm:$0xf]
        %v227 = vld [vmem:[%s1 + $0x18] sm:$0xf]
        %v228 = vld [vmem:[%s1 + $0x1c] sm:$0xf]
        %v229 = vld [vmem:[%s2] sm:$0x1]
        %v231 = vperm.slane %v229, 0
        %v241 = vunpack.c.l.b16 %v221
        %v242 = vunpack.c.l.b16 %v222
        %v243 = vunpack.c.l.b16 %v223
        %v244 = vunpack.c.l.b16 %v224
        %v245 = vunpack.c.l.b16 %v225
        %v246 = vunpack.c.l.b16 %v226
        %v247 = vunpack.c.l.b16 %v227
        %v248 = vunpack.c.l.b16 %v228
        %v249 = vpack.c.b16 %v242, %v241
        %v250 = vpack.c.b16 %v244, %v243
        %v251 = vpack.c.b16 %v246, %v245
        %v252 = vpack.c.b16 %v248, %v247
        %vm257 = vcmask 523264
        %v259 = vsel %vm257, %v205, 0
        %v262 = vsel %vm257, %v206, 0
        %v265 = vsel %vm257, %v207, 0
        %v268 = vsel %vm257, %v208, 0
        %v271 = vsel %vm257, %v209, 0
        %v274 = vsel %vm257, %v210, 0
        %v277 = vsel %vm257, %v211, 0
        %v280 = vsel %vm257, %v212, 0
        %v283 = vsel %vm257, %v213, 0
        %v286 = vsel %vm257, %v214, 0
        %v289 = vsel %vm257, %v215, 0
        %v292 = vsel %vm257, %v216, 0
        %v295 = vsel %vm257, %v217, 0
        %v298 = vsel %vm257, %v218, 0
        %v301 = vsel %vm257, %v219, 0
        %v304 = vsel %vm257, %v220, 0
        %306 = vmatpush.bf16.msra.mxu0 0
        %307 = vmatpush.bf16.msra.mxu0 0
        %308 = vmatpush.bf16.msra.mxu0 0
        %309 = vmatpush.bf16.msra.mxu0 0
        %310 = vmatpush.bf16.msra.mxu0 %v252
        %311 = vmatpush.bf16.msra.mxu0 %v251
        %312 = vmatpush.bf16.msra.mxu0 %v250
        %313 = vmatpush.bf16.msra.mxu0 %v249
        %314 = vmatmul.bf16.gmra.mxu0 %v259
        %v315 = vpop.f32.mrf.mxu0
        %v316 = vadd.f32 %v231, %v315
        %v317 = vpop.f32.mrf.mxu0
        %v318 = vadd.f32 %v231, %v317
        %319 = vmatmul.bf16.gmra.mxu0 %v262
        %v320 = vpop.f32.mrf.mxu0
        %v321 = vadd.f32 %v231, %v320
        %v322 = vpop.f32.mrf.mxu0
        %v323 = vadd.f32 %v231, %v322
        %324 = vmatmul.bf16.gmra.mxu0 %v265
        %v325 = vpop.f32.mrf.mxu0
        %v326 = vadd.f32 %v231, %v325
        %v327 = vpop.f32.mrf.mxu0
        %v328 = vadd.f32 %v231, %v327
        %329 = vmatmul.bf16.gmra.mxu0 %v268
        %v330 = vpop.f32.mrf.mxu0
        %v331 = vadd.f32 %v231, %v330
        %v332 = vpop.f32.mrf.mxu0
        %v333 = vadd.f32 %v231, %v332
        %334 = vmatmul.bf16.gmra.mxu0 %v271
        %v335 = vpop.f32.mrf.mxu0
        %v336 = vadd.f32 %v231, %v335
        %v337 = vpop.f32.mrf.mxu0
        %v338 = vadd.f32 %v231, %v337
        %339 = vmatmul.bf16.gmra.mxu0 %v274
        %v340 = vpop.f32.mrf.mxu0
        %v341 = vadd.f32 %v231, %v340
        %v342 = vpop.f32.mrf.mxu0
        %v343 = vadd.f32 %v231, %v342
        %344 = vmatmul.bf16.gmra.mxu0 %v277
        %v345 = vpop.f32.mrf.mxu0
        %v346 = vadd.f32 %v231, %v345
        %v347 = vpop.f32.mrf.mxu0
        %v348 = vadd.f32 %v231, %v347
        %349 = vmatmul.bf16.gmra.mxu0 %v280
        %v350 = vpop.f32.mrf.mxu0
        %v351 = vadd.f32 %v231, %v350
        %v352 = vpop.f32.mrf.mxu0
        %v353 = vadd.f32 %v231, %v352
        %354 = vmatmul.bf16.gmra.mxu0 %v283
        %v355 = vpop.f32.mrf.mxu0
        %v356 = vadd.f32 %v231, %v355
        %v357 = vpop.f32.mrf.mxu0
        %v358 = vadd.f32 %v231, %v357
        %359 = vmatmul.bf16.gmra.mxu0 %v286
        %v360 = vpop.f32.mrf.mxu0
        %v361 = vadd.f32 %v231, %v360
        %v362 = vpop.f32.mrf.mxu0
        %v363 = vadd.f32 %v231, %v362
        %364 = vmatmul.bf16.gmra.mxu0 %v289
        %v365 = vpop.f32.mrf.mxu0
        %v366 = vadd.f32 %v231, %v365
        %v367 = vpop.f32.mrf.mxu0
        %v368 = vadd.f32 %v231, %v367
        %369 = vmatmul.bf16.gmra.mxu0 %v292
        %v370 = vpop.f32.mrf.mxu0
        %v371 = vadd.f32 %v231, %v370
        %v372 = vpop.f32.mrf.mxu0
        %v373 = vadd.f32 %v231, %v372
        %374 = vmatmul.bf16.gmra.mxu0 %v295
        %v375 = vpop.f32.mrf.mxu0
        %v376 = vadd.f32 %v231, %v375
        %v377 = vpop.f32.mrf.mxu0
        %v378 = vadd.f32 %v231, %v377
        %379 = vmatmul.bf16.gmra.mxu0 %v298
        %v380 = vpop.f32.mrf.mxu0
        %v381 = vadd.f32 %v231, %v380
        %v382 = vpop.f32.mrf.mxu0
        %v383 = vadd.f32 %v231, %v382
        %384 = vmatmul.bf16.gmra.mxu0 %v301
        %v385 = vpop.f32.mrf.mxu0
        %v386 = vadd.f32 %v231, %v385
        %v387 = vpop.f32.mrf.mxu0
        %v388 = vadd.f32 %v231, %v387
        %389 = vmatmul.bf16.gmra.mxu0 %v304
        %v390 = vpop.f32.mrf.mxu0
        %v391 = vadd.f32 %v231, %v390
        %v392 = vpop.f32.mrf.mxu0
        %v393 = vadd.f32 %v231, %v392
        %394 = vdwg.mxu0
        %395 = vmax.xlane.f32.xlu0 %v316
        %v396 = vpop.xlane.xlu0 %395
        %397 = vmax.xlane.f32.xlu0 %v318
        %v398 = vpop.xlane.xlu0 %397
        %399 = vmax.xlane.f32.xlu0 %v321
        %v400 = vpop.xlane.xlu0 %399
        %401 = vmax.xlane.f32.xlu0 %v323
        %v402 = vpop.xlane.xlu0 %401
        %403 = vmax.xlane.f32.xlu0 %v326
        %v404 = vpop.xlane.xlu0 %403
        %405 = vmax.xlane.f32.xlu0 %v328
        %v406 = vpop.xlane.xlu0 %405
        %407 = vmax.xlane.f32.xlu0 %v331
        %v408 = vpop.xlane.xlu0 %407
        %409 = vmax.xlane.f32.xlu0 %v333
        %v410 = vpop.xlane.xlu0 %409
        %411 = vmax.xlane.f32.xlu0 %v336
        %v412 = vpop.xlane.xlu0 %411
        %413 = vmax.xlane.f32.xlu0 %v338
        %v414 = vpop.xlane.xlu0 %413
        %415 = vmax.xlane.f32.xlu0 %v341
        %v416 = vpop.xlane.xlu0 %415
        %417 = vmax.xlane.f32.xlu0 %v343
        %v418 = vpop.xlane.xlu0 %417
        %419 = vmax.xlane.f32.xlu0 %v346
        %v420 = vpop.xlane.xlu0 %419
        %421 = vmax.xlane.f32.xlu0 %v348
        %v422 = vpop.xlane.xlu0 %421
        %423 = vmax.xlane.f32.xlu0 %v351
        %v424 = vpop.xlane.xlu0 %423
        %425 = vmax.xlane.f32.xlu0 %v353
        %v426 = vpop.xlane.xlu0 %425
        %427 = vmax.xlane.f32.xlu0 %v356
        %v428 = vpop.xlane.xlu0 %427
        %429 = vmax.xlane.f32.xlu0 %v358
        %v430 = vpop.xlane.xlu0 %429
        %431 = vmax.xlane.f32.xlu0 %v361
        %v432 = vpop.xlane.xlu0 %431
        %433 = vmax.xlane.f32.xlu0 %v363
        %v434 = vpop.xlane.xlu0 %433
        %435 = vmax.xlane.f32.xlu0 %v366
        %v436 = vpop.xlane.xlu0 %435
        %437 = vmax.xlane.f32.xlu0 %v368
        %v438 = vpop.xlane.xlu0 %437
        %439 = vmax.xlane.f32.xlu0 %v371
        %v440 = vpop.xlane.xlu0 %439
        %441 = vmax.xlane.f32.xlu0 %v373
        %v442 = vpop.xlane.xlu0 %441
        %443 = vmax.xlane.f32.xlu0 %v376
        %v444 = vpop.xlane.xlu0 %443
        %445 = vmax.xlane.f32.xlu0 %v378
        %v446 = vpop.xlane.xlu0 %445
        %447 = vmax.xlane.f32.xlu0 %v381
        %v448 = vpop.xlane.xlu0 %447
        %449 = vmax.xlane.f32.xlu0 %v383
        %v450 = vpop.xlane.xlu0 %449
        %451 = vmax.xlane.f32.xlu0 %v386
        %v452 = vpop.xlane.xlu0 %451
        %453 = vmax.xlane.f32.xlu0 %v388
        %v454 = vpop.xlane.xlu0 %453
        %455 = vmax.xlane.f32.xlu0 %v391
        %v456 = vpop.xlane.xlu0 %455
        %457 = vmax.xlane.f32.xlu0 %v393
        %v458 = vpop.xlane.xlu0 %457
        %v459 = vsub.f32 %v316, %v396
        %v460 = vsub.f32 %v318, %v398
        %v461 = vsub.f32 %v321, %v400
        %v462 = vsub.f32 %v323, %v402
        %v463 = vsub.f32 %v326, %v404
        %v464 = vsub.f32 %v328, %v406
        %v465 = vsub.f32 %v331, %v408
        %v466 = vsub.f32 %v333, %v410
        %v467 = vsub.f32 %v336, %v412
        %v468 = vsub.f32 %v338, %v414
        %v469 = vsub.f32 %v341, %v416
        %v470 = vsub.f32 %v343, %v418
        %v471 = vsub.f32 %v346, %v420
        %v472 = vsub.f32 %v348, %v422
        %v473 = vsub.f32 %v351, %v424
        %v474 = vsub.f32 %v353, %v426
        %v475 = vsub.f32 %v356, %v428
        %v476 = vsub.f32 %v358, %v430
        %v477 = vsub.f32 %v361, %v432
        %v478 = vsub.f32 %v363, %v434
        %v479 = vsub.f32 %v366, %v436
        %v480 = vsub.f32 %v368, %v438
        %v481 = vsub.f32 %v371, %v440
        %v482 = vsub.f32 %v373, %v442
        %v483 = vsub.f32 %v376, %v444
        %v484 = vsub.f32 %v378, %v446
        %v485 = vsub.f32 %v381, %v448
        %v486 = vsub.f32 %v383, %v450
        %v487 = vsub.f32 %v386, %v452
        %v488 = vsub.f32 %v388, %v454
        %v489 = vsub.f32 %v391, %v456
        %v490 = vsub.f32 %v393, %v458
        %v491 = vmul.f32 %v459, 1.442695
        %v492 = vpow.pop %v491
        %v493 = vmul.f32 %v460, 1.442695
        %v494 = vpow.pop %v493
        %v495 = vmul.f32 %v461, 1.442695
        %v496 = vpow.pop %v495
        %v497 = vmul.f32 %v462, 1.442695
        %v498 = vpow.pop %v497
        %v499 = vmul.f32 %v463, 1.442695
        %v500 = vpow.pop %v499
        %v501 = vmul.f32 %v464, 1.442695
        %v502 = vpow.pop %v501
        %v503 = vmul.f32 %v465, 1.442695
        %v504 = vpow.pop %v503
        %v505 = vmul.f32 %v466, 1.442695
        %v506 = vpow.pop %v505
        %v507 = vmul.f32 %v467, 1.442695
        %v508 = vpow.pop %v507
        %v509 = vmul.f32 %v468, 1.442695
        %v510 = vpow.pop %v509
        %v511 = vmul.f32 %v469, 1.442695
        %v512 = vpow.pop %v511
        %v513 = vmul.f32 %v470, 1.442695
        %v514 = vpow.pop %v513
        %v515 = vmul.f32 %v471, 1.442695
        %v516 = vpow.pop %v515
        %v517 = vmul.f32 %v472, 1.442695
        %v518 = vpow.pop %v517
        %v519 = vmul.f32 %v473, 1.442695
        %v520 = vpow.pop %v519
        %v521 = vmul.f32 %v474, 1.442695
        %v522 = vpow.pop %v521
        %v523 = vmul.f32 %v475, 1.442695
        %v524 = vpow.pop %v523
        %v525 = vmul.f32 %v476, 1.442695
        %v526 = vpow.pop %v525
        %v527 = vmul.f32 %v477, 1.442695
        %v528 = vpow.pop %v527
        %v529 = vmul.f32 %v478, 1.442695
        %v530 = vpow.pop %v529
        %v531 = vmul.f32 %v479, 1.442695
        %v532 = vpow.pop %v531
        %v533 = vmul.f32 %v480, 1.442695
        %v534 = vpow.pop %v533
        %v535 = vmul.f32 %v481, 1.442695
        %v536 = vpow.pop %v535
        %v537 = vmul.f32 %v482, 1.442695
        %v538 = vpow.pop %v537
        %v539 = vmul.f32 %v483, 1.442695
        %v540 = vpow.pop %v539
        %v541 = vmul.f32 %v484, 1.442695
        %v542 = vpow.pop %v541
        %v543 = vmul.f32 %v485, 1.442695
        %v544 = vpow.pop %v543
        %v545 = vmul.f32 %v486, 1.442695
        %v546 = vpow.pop %v545
        %v547 = vmul.f32 %v487, 1.442695
        %v548 = vpow.pop %v547
        %v549 = vmul.f32 %v488, 1.442695
        %v550 = vpow.pop %v549
        %v551 = vmul.f32 %v489, 1.442695
        %v552 = vpow.pop %v551
        %v553 = vmul.f32 %v490, 1.442695
        %v554 = vpow.pop %v553
        %555 = vadd.xlane.f32.xlu0 %v492
        %v556 = vpop.xlane.xlu0 %555
        %557 = vadd.xlane.f32.xlu0 %v494
        %v558 = vpop.xlane.xlu0 %557
        %559 = vadd.xlane.f32.xlu0 %v496
        %v560 = vpop.xlane.xlu0 %559
        %561 = vadd.xlane.f32.xlu0 %v498
        %v562 = vpop.xlane.xlu0 %561
        %563 = vadd.xlane.f32.xlu0 %v500
        %v564 = vpop.xlane.xlu0 %563
        %565 = vadd.xlane.f32.xlu0 %v502
        %v566 = vpop.xlane.xlu0 %565
        %567 = vadd.xlane.f32.xlu0 %v504
        %v568 = vpop.xlane.xlu0 %567
        %569 = vadd.xlane.f32.xlu0 %v506
        %v570 = vpop.xlane.xlu0 %569
        %571 = vadd.xlane.f32.xlu0 %v508
        %v572 = vpop.xlane.xlu0 %571
        %573 = vadd.xlane.f32.xlu0 %v510
        %v574 = vpop.xlane.xlu0 %573
        %575 = vadd.xlane.f32.xlu0 %v512
        %v576 = vpop.xlane.xlu0 %575
        %577 = vadd.xlane.f32.xlu0 %v514
        %v578 = vpop.xlane.xlu0 %577
        %579 = vadd.xlane.f32.xlu0 %v516
        %v580 = vpop.xlane.xlu0 %579
        %581 = vadd.xlane.f32.xlu0 %v518
        %v582 = vpop.xlane.xlu0 %581
        %583 = vadd.xlane.f32.xlu0 %v520
        %v584 = vpop.xlane.xlu0 %583
        %585 = vadd.xlane.f32.xlu0 %v522
        %v586 = vpop.xlane.xlu0 %585
        %587 = vadd.xlane.f32.xlu0 %v524
        %v588 = vpop.xlane.xlu0 %587
        %589 = vadd.xlane.f32.xlu0 %v526
        %v590 = vpop.xlane.xlu0 %589
        %591 = vadd.xlane.f32.xlu0 %v528
        %v592 = vpop.xlane.xlu0 %591
        %593 = vadd.xlane.f32.xlu0 %v530
        %v594 = vpop.xlane.xlu0 %593
        %595 = vadd.xlane.f32.xlu0 %v532
        %v596 = vpop.xlane.xlu0 %595
        %597 = vadd.xlane.f32.xlu0 %v534
        %v598 = vpop.xlane.xlu0 %597
        %599 = vadd.xlane.f32.xlu0 %v536
        %v600 = vpop.xlane.xlu0 %599
        %601 = vadd.xlane.f32.xlu0 %v538
        %v602 = vpop.xlane.xlu0 %601
        %603 = vadd.xlane.f32.xlu0 %v540
        %v604 = vpop.xlane.xlu0 %603
        %605 = vadd.xlane.f32.xlu0 %v542
        %v606 = vpop.xlane.xlu0 %605
        %607 = vadd.xlane.f32.xlu0 %v544
        %v608 = vpop.xlane.xlu0 %607
        %609 = vadd.xlane.f32.xlu0 %v546
        %v610 = vpop.xlane.xlu0 %609
        %611 = vadd.xlane.f32.xlu0 %v548
        %v612 = vpop.xlane.xlu0 %611
        %613 = vadd.xlane.f32.xlu0 %v550
        %v614 = vpop.xlane.xlu0 %613
        %615 = vadd.xlane.f32.xlu0 %v552
        %v616 = vpop.xlane.xlu0 %615
        %617 = vadd.xlane.f32.xlu0 %v554
        %v618 = vpop.xlane.xlu0 %617
        %v619 = vrcp.pop %v556
        %v620 = vmul.f32 %v556, %v619
        %v621 = vsub.f32 1.0, %v620
        %v622 = vmul.f32 %v619, %v621
        %v623 = vadd.f32 %v619, %v622
        %vm624 = vweird.f32 %v556
        %vm625 = vweird.f32 %v619
        %vm626 = vmor %vm624, %vm625
        %v627 = vsel %vm626, %v619, %v623
        %v628 = vand.u32 2147483647, %v556
        %vm629 = vcmp.eq.f32.partialorder %v628, 8.507059e+37
        %v630 = vand.u32 %v556, 2147483648
        %v631 = vor.u32 1.1754944e-38, %v630
        %v632 = vsel %vm629, %v631, %v627
        %v633 = vrcp.pop %v558
        %v634 = vmul.f32 %v558, %v633
        %v635 = vsub.f32 1.0, %v634
        %v636 = vmul.f32 %v633, %v635
        %v637 = vadd.f32 %v633, %v636
        %vm638 = vweird.f32 %v558
        %vm639 = vweird.f32 %v633
        %vm640 = vmor %vm638, %vm639
        %v641 = vsel %vm640, %v633, %v637
        %v642 = vand.u32 2147483647, %v558
        %vm643 = vcmp.eq.f32.partialorder %v642, 8.507059e+37
        %v644 = vand.u32 %v558, 2147483648
        %v645 = vor.u32 1.1754944e-38, %v644
        %v646 = vsel %vm643, %v645, %v641
        %v647 = vrcp.pop %v560
        %v648 = vmul.f32 %v560, %v647
        %v649 = vsub.f32 1.0, %v648
        %v650 = vmul.f32 %v647, %v649
        %v651 = vadd.f32 %v647, %v650
        %vm652 = vweird.f32 %v560
        %vm653 = vweird.f32 %v647
        %vm654 = vmor %vm652, %vm653
        %v655 = vsel %vm654, %v647, %v651
        %v656 = vand.u32 2147483647, %v560
        %vm657 = vcmp.eq.f32.partialorder %v656, 8.507059e+37
        %v658 = vand.u32 %v560, 2147483648
        %v659 = vor.u32 1.1754944e-38, %v658
        %v660 = vsel %vm657, %v659, %v655
        %v661 = vrcp.pop %v562
        %v662 = vmul.f32 %v562, %v661
        %v663 = vsub.f32 1.0, %v662
        %v664 = vmul.f32 %v661, %v663
        %v665 = vadd.f32 %v661, %v664
        %vm666 = vweird.f32 %v562
        %vm667 = vweird.f32 %v661
        %vm668 = vmor %vm666, %vm667
        %v669 = vsel %vm668, %v661, %v665
        %v670 = vand.u32 2147483647, %v562
        %vm671 = vcmp.eq.f32.partialorder %v670, 8.507059e+37
        %v672 = vand.u32 %v562, 2147483648
        %v673 = vor.u32 1.1754944e-38, %v672
        %v674 = vsel %vm671, %v673, %v669
        %v675 = vrcp.pop %v564
        %v676 = vmul.f32 %v564, %v675
        %v677 = vsub.f32 1.0, %v676
        %v678 = vmul.f32 %v675, %v677
        %v679 = vadd.f32 %v675, %v678
        %vm680 = vweird.f32 %v564
        %vm681 = vweird.f32 %v675
        %vm682 = vmor %vm680, %vm681
        %v683 = vsel %vm682, %v675, %v679
        %v684 = vand.u32 2147483647, %v564
        %vm685 = vcmp.eq.f32.partialorder %v684, 8.507059e+37
        %v686 = vand.u32 %v564, 2147483648
        %v687 = vor.u32 1.1754944e-38, %v686
        %v688 = vsel %vm685, %v687, %v683
        %v689 = vrcp.pop %v566
        %v690 = vmul.f32 %v566, %v689
        %v691 = vsub.f32 1.0, %v690
        %v692 = vmul.f32 %v689, %v691
        %v693 = vadd.f32 %v689, %v692
        %vm694 = vweird.f32 %v566
        %vm695 = vweird.f32 %v689
        %vm696 = vmor %vm694, %vm695
        %v697 = vsel %vm696, %v689, %v693
        %v698 = vand.u32 2147483647, %v566
        %vm699 = vcmp.eq.f32.partialorder %v698, 8.507059e+37
        %v700 = vand.u32 %v566, 2147483648
        %v701 = vor.u32 1.1754944e-38, %v700
        %v702 = vsel %vm699, %v701, %v697
        %v703 = vrcp.pop %v568
        %v704 = vmul.f32 %v568, %v703
        %v705 = vsub.f32 1.0, %v704
        %v706 = vmul.f32 %v703, %v705
        %v707 = vadd.f32 %v703, %v706
        %vm708 = vweird.f32 %v568
        %vm709 = vweird.f32 %v703
        %vm710 = vmor %vm708, %vm709
        %v711 = vsel %vm710, %v703, %v707
        %v712 = vand.u32 2147483647, %v568
        %vm713 = vcmp.eq.f32.partialorder %v712, 8.507059e+37
        %v714 = vand.u32 %v568, 2147483648
        %v715 = vor.u32 1.1754944e-38, %v714
        %v716 = vsel %vm713, %v715, %v711
        %v717 = vrcp.pop %v570
        %v718 = vmul.f32 %v570, %v717
        %v719 = vsub.f32 1.0, %v718
        %v720 = vmul.f32 %v717, %v719
        %v721 = vadd.f32 %v717, %v720
        %vm722 = vweird.f32 %v570
        %vm723 = vweird.f32 %v717
        %vm724 = vmor %vm722, %vm723
        %v725 = vsel %vm724, %v717, %v721
        %v726 = vand.u32 2147483647, %v570
        %vm727 = vcmp.eq.f32.partialorder %v726, 8.507059e+37
        %v728 = vand.u32 %v570, 2147483648
        %v729 = vor.u32 1.1754944e-38, %v728
        %v730 = vsel %vm727, %v729, %v725
        %v731 = vrcp.pop %v572
        %v732 = vmul.f32 %v572, %v731
        %v733 = vsub.f32 1.0, %v732
        %v734 = vmul.f32 %v731, %v733
        %v735 = vadd.f32 %v731, %v734
        %vm736 = vweird.f32 %v572
        %vm737 = vweird.f32 %v731
        %vm738 = vmor %vm736, %vm737
        %v739 = vsel %vm738, %v731, %v735
        %v740 = vand.u32 2147483647, %v572
        %vm741 = vcmp.eq.f32.partialorder %v740, 8.507059e+37
        %v742 = vand.u32 %v572, 2147483648
        %v743 = vor.u32 1.1754944e-38, %v742
        %v744 = vsel %vm741, %v743, %v739
        %v745 = vrcp.pop %v574
        %v746 = vmul.f32 %v574, %v745
        %v747 = vsub.f32 1.0, %v746
        %v748 = vmul.f32 %v745, %v747
        %v749 = vadd.f32 %v745, %v748
        %vm750 = vweird.f32 %v574
        %vm751 = vweird.f32 %v745
        %vm752 = vmor %vm750, %vm751
        %v753 = vsel %vm752, %v745, %v749
        %v754 = vand.u32 2147483647, %v574
        %vm755 = vcmp.eq.f32.partialorder %v754, 8.507059e+37
        %v756 = vand.u32 %v574, 2147483648
        %v757 = vor.u32 1.1754944e-38, %v756
        %v758 = vsel %vm755, %v757, %v753
        %v759 = vrcp.pop %v576
        %v760 = vmul.f32 %v576, %v759
        %v761 = vsub.f32 1.0, %v760
        %v762 = vmul.f32 %v759, %v761
        %v763 = vadd.f32 %v759, %v762
        %vm764 = vweird.f32 %v576
        %vm765 = vweird.f32 %v759
        %vm766 = vmor %vm764, %vm765
        %v767 = vsel %vm766, %v759, %v763
        %v768 = vand.u32 2147483647, %v576
        %vm769 = vcmp.eq.f32.partialorder %v768, 8.507059e+37
        %v770 = vand.u32 %v576, 2147483648
        %v771 = vor.u32 1.1754944e-38, %v770
        %v772 = vsel %vm769, %v771, %v767
        %v773 = vrcp.pop %v578
        %v774 = vmul.f32 %v578, %v773
        %v775 = vsub.f32 1.0, %v774
        %v776 = vmul.f32 %v773, %v775
        %v777 = vadd.f32 %v773, %v776
        %vm778 = vweird.f32 %v578
        %vm779 = vweird.f32 %v773
        %vm780 = vmor %vm778, %vm779
        %v781 = vsel %vm780, %v773, %v777
        %v782 = vand.u32 2147483647, %v578
        %vm783 = vcmp.eq.f32.partialorder %v782, 8.507059e+37
        %v784 = vand.u32 %v578, 2147483648
        %v785 = vor.u32 1.1754944e-38, %v784
        %v786 = vsel %vm783, %v785, %v781
        %v787 = vrcp.pop %v580
        %v788 = vmul.f32 %v580, %v787
        %v789 = vsub.f32 1.0, %v788
        %v790 = vmul.f32 %v787, %v789
        %v791 = vadd.f32 %v787, %v790
        %vm792 = vweird.f32 %v580
        %vm793 = vweird.f32 %v787
        %vm794 = vmor %vm792, %vm793
        %v795 = vsel %vm794, %v787, %v791
        %v796 = vand.u32 2147483647, %v580
        %vm797 = vcmp.eq.f32.partialorder %v796, 8.507059e+37
        %v798 = vand.u32 %v580, 2147483648
        %v799 = vor.u32 1.1754944e-38, %v798
        %v800 = vsel %vm797, %v799, %v795
        %v801 = vrcp.pop %v582
        %v802 = vmul.f32 %v582, %v801
        %v803 = vsub.f32 1.0, %v802
        %v804 = vmul.f32 %v801, %v803
        %v805 = vadd.f32 %v801, %v804
        %vm806 = vweird.f32 %v582
        %vm807 = vweird.f32 %v801
        %vm808 = vmor %vm806, %vm807
        %v809 = vsel %vm808, %v801, %v805
        %v810 = vand.u32 2147483647, %v582
        %vm811 = vcmp.eq.f32.partialorder %v810, 8.507059e+37
        %v812 = vand.u32 %v582, 2147483648
        %v813 = vor.u32 1.1754944e-38, %v812
        %v814 = vsel %vm811, %v813, %v809
        %v815 = vrcp.pop %v584
        %v816 = vmul.f32 %v584, %v815
        %v817 = vsub.f32 1.0, %v816
        %v818 = vmul.f32 %v815, %v817
        %v819 = vadd.f32 %v815, %v818
        %vm820 = vweird.f32 %v584
        %vm821 = vweird.f32 %v815
        %vm822 = vmor %vm820, %vm821
        %v823 = vsel %vm822, %v815, %v819
        %v824 = vand.u32 2147483647, %v584
        %vm825 = vcmp.eq.f32.partialorder %v824, 8.507059e+37
        %v826 = vand.u32 %v584, 2147483648
        %v827 = vor.u32 1.1754944e-38, %v826
        %v828 = vsel %vm825, %v827, %v823
        %v829 = vrcp.pop %v586
        %v830 = vmul.f32 %v586, %v829
        %v831 = vsub.f32 1.0, %v830
        %v832 = vmul.f32 %v829, %v831
        %v833 = vadd.f32 %v829, %v832
        %vm834 = vweird.f32 %v586
        %vm835 = vweird.f32 %v829
        %vm836 = vmor %vm834, %vm835
        %v837 = vsel %vm836, %v829, %v833
        %v838 = vand.u32 2147483647, %v586
        %vm839 = vcmp.eq.f32.partialorder %v838, 8.507059e+37
        %v840 = vand.u32 %v586, 2147483648
        %v841 = vor.u32 1.1754944e-38, %v840
        %v842 = vsel %vm839, %v841, %v837
        %v843 = vrcp.pop %v588
        %v844 = vmul.f32 %v588, %v843
        %v845 = vsub.f32 1.0, %v844
        %v846 = vmul.f32 %v843, %v845
        %v847 = vadd.f32 %v843, %v846
        %vm848 = vweird.f32 %v588
        %vm849 = vweird.f32 %v843
        %vm850 = vmor %vm848, %vm849
        %v851 = vsel %vm850, %v843, %v847
        %v852 = vand.u32 2147483647, %v588
        %vm853 = vcmp.eq.f32.partialorder %v852, 8.507059e+37
        %v854 = vand.u32 %v588, 2147483648
        %v855 = vor.u32 1.1754944e-38, %v854
        %v856 = vsel %vm853, %v855, %v851
        %v857 = vrcp.pop %v590
        %v858 = vmul.f32 %v590, %v857
        %v859 = vsub.f32 1.0, %v858
        %v860 = vmul.f32 %v857, %v859
        %v861 = vadd.f32 %v857, %v860
        %vm862 = vweird.f32 %v590
        %vm863 = vweird.f32 %v857
        %vm864 = vmor %vm862, %vm863
        %v865 = vsel %vm864, %v857, %v861
        %v866 = vand.u32 2147483647, %v590
        %vm867 = vcmp.eq.f32.partialorder %v866, 8.507059e+37
        %v868 = vand.u32 %v590, 2147483648
        %v869 = vor.u32 1.1754944e-38, %v868
        %v870 = vsel %vm867, %v869, %v865
        %v871 = vrcp.pop %v592
        %v872 = vmul.f32 %v592, %v871
        %v873 = vsub.f32 1.0, %v872
        %v874 = vmul.f32 %v871, %v873
        %v875 = vadd.f32 %v871, %v874
        %vm876 = vweird.f32 %v592
        %vm877 = vweird.f32 %v871
        %vm878 = vmor %vm876, %vm877
        %v879 = vsel %vm878, %v871, %v875
        %v880 = vand.u32 2147483647, %v592
        %vm881 = vcmp.eq.f32.partialorder %v880, 8.507059e+37
        %v882 = vand.u32 %v592, 2147483648
        %v883 = vor.u32 1.1754944e-38, %v882
        %v884 = vsel %vm881, %v883, %v879
        %v885 = vrcp.pop %v594
        %v886 = vmul.f32 %v594, %v885
        %v887 = vsub.f32 1.0, %v886
        %v888 = vmul.f32 %v885, %v887
        %v889 = vadd.f32 %v885, %v888
        %vm890 = vweird.f32 %v594
        %vm891 = vweird.f32 %v885
        %vm892 = vmor %vm890, %vm891
        %v893 = vsel %vm892, %v885, %v889
        %v894 = vand.u32 2147483647, %v594
        %vm895 = vcmp.eq.f32.partialorder %v894, 8.507059e+37
        %v896 = vand.u32 %v594, 2147483648
        %v897 = vor.u32 1.1754944e-38, %v896
        %v898 = vsel %vm895, %v897, %v893
        %v899 = vrcp.pop %v596
        %v900 = vmul.f32 %v596, %v899
        %v901 = vsub.f32 1.0, %v900
        %v902 = vmul.f32 %v899, %v901
        %v903 = vadd.f32 %v899, %v902
        %vm904 = vweird.f32 %v596
        %vm905 = vweird.f32 %v899
        %vm906 = vmor %vm904, %vm905
        %v907 = vsel %vm906, %v899, %v903
        %v908 = vand.u32 2147483647, %v596
        %vm909 = vcmp.eq.f32.partialorder %v908, 8.507059e+37
        %v910 = vand.u32 %v596, 2147483648
        %v911 = vor.u32 1.1754944e-38, %v910
        %v912 = vsel %vm909, %v911, %v907
        %v913 = vrcp.pop %v598
        %v914 = vmul.f32 %v598, %v913
        %v915 = vsub.f32 1.0, %v914
        %v916 = vmul.f32 %v913, %v915
        %v917 = vadd.f32 %v913, %v916
        %vm918 = vweird.f32 %v598
        %vm919 = vweird.f32 %v913
        %vm920 = vmor %vm918, %vm919
        %v921 = vsel %vm920, %v913, %v917
        %v922 = vand.u32 2147483647, %v598
        %vm923 = vcmp.eq.f32.partialorder %v922, 8.507059e+37
        %v924 = vand.u32 %v598, 2147483648
        %v925 = vor.u32 1.1754944e-38, %v924
        %v926 = vsel %vm923, %v925, %v921
        %v927 = vrcp.pop %v600
        %v928 = vmul.f32 %v600, %v927
        %v929 = vsub.f32 1.0, %v928
        %v930 = vmul.f32 %v927, %v929
        %v931 = vadd.f32 %v927, %v930
        %vm932 = vweird.f32 %v600
        %vm933 = vweird.f32 %v927
        %vm934 = vmor %vm932, %vm933
        %v935 = vsel %vm934, %v927, %v931
        %v936 = vand.u32 2147483647, %v600
        %vm937 = vcmp.eq.f32.partialorder %v936, 8.507059e+37
        %v938 = vand.u32 %v600, 2147483648
        %v939 = vor.u32 1.1754944e-38, %v938
        %v940 = vsel %vm937, %v939, %v935
        %v941 = vrcp.pop %v602
        %v942 = vmul.f32 %v602, %v941
        %v943 = vsub.f32 1.0, %v942
        %v944 = vmul.f32 %v941, %v943
        %v945 = vadd.f32 %v941, %v944
        %vm946 = vweird.f32 %v602
        %vm947 = vweird.f32 %v941
        %vm948 = vmor %vm946, %vm947
        %v949 = vsel %vm948, %v941, %v945
        %v950 = vand.u32 2147483647, %v602
        %vm951 = vcmp.eq.f32.partialorder %v950, 8.507059e+37
        %v952 = vand.u32 %v602, 2147483648
        %v953 = vor.u32 1.1754944e-38, %v952
        %v954 = vsel %vm951, %v953, %v949
        %v955 = vrcp.pop %v604
        %v956 = vmul.f32 %v604, %v955
        %v957 = vsub.f32 1.0, %v956
        %v958 = vmul.f32 %v955, %v957
        %v959 = vadd.f32 %v955, %v958
        %vm960 = vweird.f32 %v604
        %vm961 = vweird.f32 %v955
        %vm962 = vmor %vm960, %vm961
        %v963 = vsel %vm962, %v955, %v959
        %v964 = vand.u32 2147483647, %v604
        %vm965 = vcmp.eq.f32.partialorder %v964, 8.507059e+37
        %v966 = vand.u32 %v604, 2147483648
        %v967 = vor.u32 1.1754944e-38, %v966
        %v968 = vsel %vm965, %v967, %v963
        %v969 = vrcp.pop %v606
        %v970 = vmul.f32 %v606, %v969
        %v971 = vsub.f32 1.0, %v970
        %v972 = vmul.f32 %v969, %v971
        %v973 = vadd.f32 %v969, %v972
        %vm974 = vweird.f32 %v606
        %vm975 = vweird.f32 %v969
        %vm976 = vmor %vm974, %vm975
        %v977 = vsel %vm976, %v969, %v973
        %v978 = vand.u32 2147483647, %v606
        %vm979 = vcmp.eq.f32.partialorder %v978, 8.507059e+37
        %v980 = vand.u32 %v606, 2147483648
        %v981 = vor.u32 1.1754944e-38, %v980
        %v982 = vsel %vm979, %v981, %v977
        %v983 = vrcp.pop %v608
        %v984 = vmul.f32 %v608, %v983
        %v985 = vsub.f32 1.0, %v984
        %v986 = vmul.f32 %v983, %v985
        %v987 = vadd.f32 %v983, %v986
        %vm988 = vweird.f32 %v608
        %vm989 = vweird.f32 %v983
        %vm990 = vmor %vm988, %vm989
        %v991 = vsel %vm990, %v983, %v987
        %v992 = vand.u32 2147483647, %v608
        %vm993 = vcmp.eq.f32.partialorder %v992, 8.507059e+37
        %v994 = vand.u32 %v608, 2147483648
        %v995 = vor.u32 1.1754944e-38, %v994
        %v996 = vsel %vm993, %v995, %v991
        %v997 = vrcp.pop %v610
        %v998 = vmul.f32 %v610, %v997
        %v999 = vsub.f32 1.0, %v998
        %v1000 = vmul.f32 %v997, %v999
        %v1001 = vadd.f32 %v997, %v1000
        %vm1002 = vweird.f32 %v610
        %vm1003 = vweird.f32 %v997
        %vm1004 = vmor %vm1002, %vm1003
        %v1005 = vsel %vm1004, %v997, %v1001
        %v1006 = vand.u32 2147483647, %v610
        %vm1007 = vcmp.eq.f32.partialorder %v1006, 8.507059e+37
        %v1008 = vand.u32 %v610, 2147483648
        %v1009 = vor.u32 1.1754944e-38, %v1008
        %v1010 = vsel %vm1007, %v1009, %v1005
        %v1011 = vrcp.pop %v612
        %v1012 = vmul.f32 %v612, %v1011
        %v1013 = vsub.f32 1.0, %v1012
        %v1014 = vmul.f32 %v1011, %v1013
        %v1015 = vadd.f32 %v1011, %v1014
        %vm1016 = vweird.f32 %v612
        %vm1017 = vweird.f32 %v1011
        %vm1018 = vmor %vm1016, %vm1017
        %v1019 = vsel %vm1018, %v1011, %v1015
        %v1020 = vand.u32 2147483647, %v612
        %vm1021 = vcmp.eq.f32.partialorder %v1020, 8.507059e+37
        %v1022 = vand.u32 %v612, 2147483648
        %v1023 = vor.u32 1.1754944e-38, %v1022
        %v1024 = vsel %vm1021, %v1023, %v1019
        %v1025 = vrcp.pop %v614
        %v1026 = vmul.f32 %v614, %v1025
        %v1027 = vsub.f32 1.0, %v1026
        %v1028 = vmul.f32 %v1025, %v1027
        %v1029 = vadd.f32 %v1025, %v1028
        %vm1030 = vweird.f32 %v614
        %vm1031 = vweird.f32 %v1025
        %vm1032 = vmor %vm1030, %vm1031
        %v1033 = vsel %vm1032, %v1025, %v1029
        %v1034 = vand.u32 2147483647, %v614
        %vm1035 = vcmp.eq.f32.partialorder %v1034, 8.507059e+37
        %v1036 = vand.u32 %v614, 2147483648
        %v1037 = vor.u32 1.1754944e-38, %v1036
        %v1038 = vsel %vm1035, %v1037, %v1033
        %v1039 = vrcp.pop %v616
        %v1040 = vmul.f32 %v616, %v1039
        %v1041 = vsub.f32 1.0, %v1040
        %v1042 = vmul.f32 %v1039, %v1041
        %v1043 = vadd.f32 %v1039, %v1042
        %vm1044 = vweird.f32 %v616
        %vm1045 = vweird.f32 %v1039
        %vm1046 = vmor %vm1044, %vm1045
        %v1047 = vsel %vm1046, %v1039, %v1043
        %v1048 = vand.u32 2147483647, %v616
        %vm1049 = vcmp.eq.f32.partialorder %v1048, 8.507059e+37
        %v1050 = vand.u32 %v616, 2147483648
        %v1051 = vor.u32 1.1754944e-38, %v1050
        %v1052 = vsel %vm1049, %v1051, %v1047
        %v1053 = vrcp.pop %v618
        %v1054 = vmul.f32 %v618, %v1053
        %v1055 = vsub.f32 1.0, %v1054
        %v1056 = vmul.f32 %v1053, %v1055
        %v1057 = vadd.f32 %v1053, %v1056
        %vm1058 = vweird.f32 %v618
        %vm1059 = vweird.f32 %v1053
        %vm1060 = vmor %vm1058, %vm1059
        %v1061 = vsel %vm1060, %v1053, %v1057
        %v1062 = vand.u32 2147483647, %v618
        %vm1063 = vcmp.eq.f32.partialorder %v1062, 8.507059e+37
        %v1064 = vand.u32 %v618, 2147483648
        %v1065 = vor.u32 1.1754944e-38, %v1064
        %v1066 = vsel %vm1063, %v1065, %v1061
        %v1067 = vmul.f32 %v492, %v632
        %v1068 = vmul.f32 %v494, %v646
        %v1069 = vmul.f32 %v496, %v660
        %v1070 = vmul.f32 %v498, %v674
        %v1071 = vmul.f32 %v500, %v688
        %v1072 = vmul.f32 %v502, %v702
        %v1073 = vmul.f32 %v504, %v716
        %v1074 = vmul.f32 %v506, %v730
        %v1075 = vmul.f32 %v508, %v744
        %v1076 = vmul.f32 %v510, %v758
        %v1077 = vmul.f32 %v512, %v772
        %v1078 = vmul.f32 %v514, %v786
        %v1079 = vmul.f32 %v516, %v800
        %v1080 = vmul.f32 %v518, %v814
        %v1081 = vmul.f32 %v520, %v828
        %v1082 = vmul.f32 %v522, %v842
        %v1083 = vmul.f32 %v524, %v856
        %v1084 = vmul.f32 %v526, %v870
        %v1085 = vmul.f32 %v528, %v884
        %v1086 = vmul.f32 %v530, %v898
        %v1087 = vmul.f32 %v532, %v912
        %v1088 = vmul.f32 %v534, %v926
        %v1089 = vmul.f32 %v536, %v940
        %v1090 = vmul.f32 %v538, %v954
        %v1091 = vmul.f32 %v540, %v968
        %v1092 = vmul.f32 %v542, %v982
        %v1093 = vmul.f32 %v544, %v996
        %v1094 = vmul.f32 %v546, %v1010
        %v1095 = vmul.f32 %v548, %v1024
        %v1096 = vmul.f32 %v550, %v1038
        %v1097 = vmul.f32 %v552, %v1052
        %v1098 = vmul.f32 %v554, %v1066
        %1099 = vst [vmem:[%s164] sm:$0xff] %v1067
        %1100 = vst [vmem:[%s164 + $0x8] sm:$0xff] %v1068
        %1101 = vst [vmem:[%s164 + $0x10] sm:$0xff] %v1069
        %1102 = vst [vmem:[%s164 + $0x18] sm:$0xff] %v1070
        %1103 = vst [vmem:[%s164 + $0x20] sm:$0xff] %v1071
        %1104 = vst [vmem:[%s164 + $0x28] sm:$0xff] %v1072
        %1105 = vst [vmem:[%s164 + $0x30] sm:$0xff] %v1073
        %1106 = vst [vmem:[%s164 + $0x38] sm:$0xff] %v1074
        %1107 = vst [vmem:[%s164 + $0x40] sm:$0xff] %v1075
        %1108 = vst [vmem:[%s164 + $0x48] sm:$0xff] %v1076
        %1109 = vst [vmem:[%s164 + $0x50] sm:$0xff] %v1077
        %1110 = vst [vmem:[%s164 + $0x58] sm:$0xff] %v1078
        %1111 = vst [vmem:[%s164 + $0x60] sm:$0xff] %v1079
        %1112 = vst [vmem:[%s164 + $0x68] sm:$0xff] %v1080
        %1113 = vst [vmem:[%s164 + $0x70] sm:$0xff] %v1081
        %1114 = vst [vmem:[%s164 + $0x78] sm:$0xff] %v1082
        %1115 = vst [vmem:[%s164 + $0x80] sm:$0xff] %v1083
        %1116 = vst [vmem:[%s164 + $0x88] sm:$0xff] %v1084
        %1117 = vst [vmem:[%s164 + $0x90] sm:$0xff] %v1085
        %1118 = vst [vmem:[%s164 + $0x98] sm:$0xff] %v1086
        %1119 = vst [vmem:[%s164 + $0xa0] sm:$0xff] %v1087
        %1120 = vst [vmem:[%s164 + $0xa8] sm:$0xff] %v1088
        %1121 = vst [vmem:[%s164 + $0xb0] sm:$0xff] %v1089
        %1122 = vst [vmem:[%s164 + $0xb8] sm:$0xff] %v1090
        %1123 = vst [vmem:[%s164 + $0xc0] sm:$0xff] %v1091
        %1124 = vst [vmem:[%s164 + $0xc8] sm:$0xff] %v1092
        %1125 = vst [vmem:[%s164 + $0xd0] sm:$0xff] %v1093
        %1126 = vst [vmem:[%s164 + $0xd8] sm:$0xff] %v1094
        %1127 = vst [vmem:[%s164 + $0xe0] sm:$0xff] %v1095
        %1128 = vst [vmem:[%s164 + $0xe8] sm:$0xff] %v1096
        %1129 = vst [vmem:[%s164 + $0xf0] sm:$0xff] %v1097
        %1130 = vst [vmem:[%s164 + $0xf8] sm:$0xff] %v1098
        %s1131 = sand.u32 %s93, 1
        %s1132 = scalar_lea.sflag [#allocation3], %s1131
        %s1133 = sand.u32 %s93, 1
        %s1134 = smul.addr %s1133, 256
        %s1135 = scalar_lea.vmem [#allocation2], %s1134
        // Predicated region
        $region33: #{tpu_custom_call.1} parent=31 // pred_check
          %p1136 = pneg %p103
        $region34: #{tpu_custom_call.1} parent=31 // pred_check_branch
          %1138 = sbr.rel (%p1136) target = $region36
        $region35: #{tpu_custom_call.1} parent=31 // pred_region
          %s1139 = smul.u32 32, %s17
          %1141 = vsyncadd %s1132, 0
          %s1142 = smul.addr %s1139, 8
          %s1143 = scalar_lea.hbm %s3, %s1142
          %s1144 = sshll.u32 %s1135, 4
          %s1145 = int_to_ptr.vmem [resolvable:$true] %s1144
          %s1146 = sshll.u32 %s1143, 4
          %s1147 = int_to_ptr.hbm [resolvable:$true] %s1146
          %1152 = dma.vmem_to_hbm [thread:$0]  %s1145, 4096, %s1147, %s1132, 128, 128, 8
        $region36: #{tpu_custom_call.1} parent=31 // pred_fallthru
          _
      $region32: #{tpu_custom_call.1} parent=5 // pred_fallthru
        _
      %p1153 = scmp.le.s32.totalorder 2, %s12
      // Predicated region
      $region37: #{tpu_custom_call.1} parent=5 // pred_check
        %p1154 = pneg %p1153
      $region38: #{tpu_custom_call.1} parent=5 // pred_check_branch
        %1156 = sbr.rel (%p1154) target = $region40
      $region39: #{tpu_custom_call.1} parent=5 // pred_region
        %s1157 = ssub.s32 %s12, 2
        // Predicated region
        $region41: #{tpu_custom_call.1} parent=39 // pred_check
          %p1158 = pneg %p109
        $region42: #{tpu_custom_call.1} parent=39 // pred_check_branch
          %1160 = sbr.rel (%p1158) target = $region44
        $region43: #{tpu_custom_call.1} parent=39 // pred_region
          %s1161 = sand.u32 %s94, 1
          %s1162 = scalar_lea.sflag [#allocation3], %s1161
          %s1163 = sand.u32 %s94, 1
          %s1164 = smul.addr %s1163, 256
          %s1165 = scalar_lea.vmem [#allocation2], %s1164
          %1167 = dma.done %s1162, 4096
        $region44: #{tpu_custom_call.1} parent=39 // pred_fallthru
          _
      $region40: #{tpu_custom_call.1} parent=5 // pred_fallthru
        _
    $region6: #{tpu_custom_call.1} parent=1 // loop_footer
      %s16 = sadd.s32 1, %s12
    $region7: #{tpu_custom_call.1} parent=1 // loop_footer_branch
      %11 = sbr.rel target = $region3
    $region8: #{tpu_custom_call.1} parent=1 // loop_exit
      _
    %1168 = vsyncpa [#allocation3], 1
    %s1169 = scalar_lea.sflag [#allocation3], 1
    %1170 = vsyncpa %s1169, 1

</llo_original>
